<compile_context>
chip_gen: v7x
topology: tpu7x:2x2x1
jax: 0.10.0
libtpu: 0.0.40
codegen_flags: <defaults>
</compile_context>

<pallas_src>
import functools
import math

import jax
import jax.numpy as jnp
from jax import lax
from jax.experimental import pallas as pl
from jax.experimental.pallas import tpu as pltpu


def _round_up(x, m):
    return (x + m - 1) // m * m


def _pad2(x, rows, cols):
    return jnp.pad(x, ((0, rows - x.shape[0]), (0, cols - x.shape[1])))


# --------------------------------- kernels -----------------------------------

def _k_project_kernel(x_ref, w_ref, b_ref, out_ref):
    """out = x @ w + b (single MXU matmul, f32 accumulation)."""
    acc = jnp.dot(x_ref[...], w_ref[...], preferred_element_type=jnp.float32)
    out_ref[...] = (acc + b_ref[...]).astype(out_ref.dtype)


def _attn_onepass_kernel(approx, q_ref, wq_ref, kproj_ref, bias_ref, out_ref):
    """Resident-key path: fused scaled-Q projection -> one full-D NT score matmul
    against the resident projected K -> additive bias/mask row -> softmax."""
    q = jnp.dot(q_ref[...], wq_ref[...],
                preferred_element_type=jnp.float32).astype(kproj_ref.dtype)
    s = lax.dot_general(q, kproj_ref[...], (((1,), (1,)), ((), ())),
                        preferred_element_type=jnp.float32)
    s = s + bias_ref[...]                       # mask (-1e30 on pad) + bq term, f32
    m = jnp.max(s, axis=-1, keepdims=True)
    e = jnp.exp(s - m)
    denom = jnp.sum(e, axis=-1, keepdims=True)
    out_ref[...] = (e * pl.reciprocal(denom, approx=approx)).astype(out_ref.dtype)


def _attn_stats_kernel(q_ref, wq_ref, kproj_ref, bias_ref, z_ref,
                       qproj_ref, m_ref, l_ref):
    """Key-tiled pass A: running row-max m / row-sum l over key tiles; at the
    last key tile emit z = m + log(l) so pass B only needs exp(s - z)."""
    j = pl.program_id(1)

    @pl.when(j == 0)
    def _():
        qproj_ref[...] = jnp.dot(
            q_ref[...], wq_ref[...],
            preferred_element_type=jnp.float32).astype(qproj_ref.dtype)
        m_ref[...] = jnp.full(m_ref.shape, -jnp.inf, m_ref.dtype)
        l_ref[...] = jnp.zeros(l_ref.shape, l_ref.dtype)

    s = lax.dot_general(qproj_ref[...], kproj_ref[...], (((1,), (1,)), ((), ())),
                        preferred_element_type=jnp.float32)
    s = s + bias_ref[...]
    m_prev = m_ref[...]
    m_new = jnp.maximum(m_prev, jnp.max(s, axis=-1, keepdims=True))
    l_ref[...] = (l_ref[...] * jnp.exp(m_prev - m_new)
                  + jnp.sum(jnp.exp(s - m_new), axis=-1, keepdims=True))
    m_ref[...] = m_new

    @pl.when(j == pl.num_programs(1) - 1)
    def _():
        z_ref[...] = m_ref[...] + jnp.log(l_ref[...])


def _attn_norm_kernel(q_ref, wq_ref, kproj_ref, bias_ref, z_ref, out_ref,
                      qproj_ref):
    """Key-tiled pass B: p[i, j] = exp(s[i, j] - z[i]); lane-dense block output."""
    @pl.when(pl.program_id(1) == 0)
    def _():
        qproj_ref[...] = jnp.dot(
            q_ref[...], wq_ref[...],
            preferred_element_type=jnp.float32).astype(qproj_ref.dtype)

    s = lax.dot_general(qproj_ref[...], kproj_ref[...], (((1,), (1,)), ((), ())),
                        preferred_element_type=jnp.float32)
    s = s + bias_ref[...]
    out_ref[...] = jnp.exp(s - z_ref[...]).astype(out_ref.dtype)


# ------------------------------ spec helpers ----------------------------------

def _const_spec(block_shape, single_buffer):
    """BlockSpec whose block index never changes; single-buffer it when allowed
    (constant-index operands gain nothing from double buffering)."""
    idx = lambda *_: (0,) * len(block_shape)
    if single_buffer:
        return pl.BlockSpec(block_shape, idx, pipeline_mode=pl.Buffered(1))
    return pl.BlockSpec(block_shape, idx)


def _compiler_params(dim_semantics, footprint_bytes):
    """Footprint-derived scoped-VMEM limit with headroom.  Never the full
    physical VMEM (64 MiB/TC on v7x, 128 MiB on v5e/v6e)."""
    try:
        phys = pltpu.get_tpu_info().vmem_capacity_bytes
    except Exception:
        phys = 64 * 1024 * 1024                     # smallest current generation
    ceiling = max(32 * 1024 * 1024, phys - 16 * 1024 * 1024)
    limit = min(ceiling,
                max(32 * 1024 * 1024, footprint_bytes * 5 // 4 + (4 << 20)))
    return pltpu.CompilerParams(dimension_semantics=dim_semantics,
                                vmem_limit_bytes=int(limit))


# --------------------------------- wrapper ------------------------------------

def multi_headed_attention(query, key, params, h, *,
                           compute_dtype=jnp.bfloat16, out_dtype=None,
                           block_q=256, block_k=2048, max_resident_keys=4096):
    """query/key: (N, input_dim) float32.  Returns p_attn (N_q, N_k) in out_dtype
    (defaults to compute_dtype)."""
    n_q, input_dim = query.shape
    n_k, _ = key.shape
    assert input_dim % h == 0
    assert block_k % 128 == 0 and block_q % 8 == 0
    d_k = input_dim // h
    cd = compute_dtype
    od = compute_dtype if out_dtype is None else out_dtype
    itsz = jnp.dtype(cd).itemsize
    osz = jnp.dtype(od).itemsize
    approx = jnp.dtype(cd) == jnp.dtype(jnp.bfloat16)

    wq, bq, wk, bk, wo_w, wo_b = params
    del wo_b  # uniform shift on every score -> cancels in the softmax

    # Fold Wo head mixing and 1/sqrt(d_k) into the Q projection weights.
    scale = jnp.repeat(wo_w.reshape(h), d_k) / math.sqrt(d_k)      # (input_dim,)
    wq_t = (wq.T * scale[None, :]).astype(jnp.float32)             # (in, out)
    bq_s = (bq * scale).astype(jnp.float32)

    # Padded shapes: contraction depth multiple of 128, key axis multiple of 256
    # (lane dense, v6e/v7x 256-wide MXU friendly), q rows a multiple of the tile.
    d_pad = _round_up(max(input_dim, 128), 128)
    nk_pad = _round_up(max(n_k, 256), 256)
    tiled_keys = nk_pad > max_resident_keys
    if tiled_keys:
        blk_k = block_k
        nk_pad = _round_up(n_k, blk_k)
    else:
        blk_k = nk_pad                      # whole padded key axis resident
    blk_q = min(block_q, _round_up(n_q, 8))
    nq_pad = _round_up(n_q, blk_q)

    # Pad operands; padded feature columns are exact zeros so scores are exact.
    q_p = _pad2(query.astype(cd), nq_pad, d_pad)
    k_p = _pad2(key.astype(cd), nk_pad, d_pad)
    wq_p = _pad2(wq_t.astype(cd), d_pad, d_pad)
    wk_p = _pad2(wk.T.astype(jnp.float32).astype(cd), d_pad, d_pad)
    bk_p = _pad2(bk.reshape(1, input_dim).astype(jnp.float32), 1, d_pad)

    # Additive score-bias row (f32): carries the Q-bias term <bq*scale, K_proj[j]>
    # exactly (even with bf16 operands) and -1e30 on padded key columns.  This
    # replaces the per-element iota/cmp/select mask inside the kernel.
    qb_vec = wk.T.astype(jnp.float32) @ bq_s                       # (input_dim,)
    qbias = key.astype(jnp.float32) @ qb_vec + jnp.dot(bk.astype(jnp.float32), bq_s)
    col = jnp.arange(nk_pad)
    bias_row = jnp.where(col < n_k, jnp.pad(qbias, (0, nk_pad - n_k)),
                         -1e30).reshape(1, nk_pad).astype(jnp.float32)

    # ---- Kernel 1: project K once (512-row tiles).  Kept as its own call since
    # K_proj is re-read by every q tile (and by both passes of the tiled path).
    blk_kr = next(t for t in (512, 256, 128) if nk_pad % t == 0)
    kp_fp = (4 * blk_kr * d_pad * itsz + 2 * d_pad * d_pad * itsz + 2 * d_pad * 4)
    k_proj = pl.pallas_call(
        _k_project_kernel,
        out_shape=jax.ShapeDtypeStruct((nk_pad, d_pad), cd),
        grid=(nk_pad // blk_kr,),
        in_specs=[pl.BlockSpec((blk_kr, d_pad), lambda i: (i, 0)),
                  pl.BlockSpec((d_pad, d_pad), lambda i: (0, 0)),
                  pl.BlockSpec((1, d_pad), lambda i: (0, 0))],
        out_specs=pl.BlockSpec((blk_kr, d_pad), lambda i: (i, 0)),
        compiler_params=_compiler_params(("parallel",), kp_fp),
    )(k_p, wk_p, bk_p)

    # ---- Kernel 2: fused Q projection + scores + softmax.
    def run(single_buffer):
        nb = 1 if single_buffer else 2
        if not tiled_keys:
            fp = (2 * blk_q * d_pad * itsz + nb * d_pad * d_pad * itsz
                  + nb * nk_pad * d_pad * itsz + nb * nk_pad * 4
                  + 2 * blk_q * nk_pad * osz
                  + 3 * blk_q * nk_pad * 4)          # f32 score/exp temporaries
            return pl.pallas_call(
                functools.partial(_attn_onepass_kernel, approx),
                out_shape=jax.ShapeDtypeStruct((nq_pad, nk_pad), od),
                grid=(nq_pad // blk_q,),
                in_specs=[pl.BlockSpec((blk_q, d_pad), lambda i: (i, 0)),
                          _const_spec((d_pad, d_pad), single_buffer),
                          _const_spec((nk_pad, d_pad), single_buffer),
                          _const_spec((1, nk_pad), single_buffer)],
                out_specs=pl.BlockSpec((blk_q, nk_pad), lambda i: (i, 0)),
                compiler_params=_compiler_params(("parallel",), fp),
            )(q_p, wq_p, k_proj, bias_row)

        # Key-tiled two-pass path: removes the nk-dependent VMEM cliff (neither
        # the resident K block nor the output tile scales with n_k).
        grid = (nq_pad // blk_q, nk_pad // blk_k)
        q_spec = pl.BlockSpec((blk_q, d_pad), lambda i, j: (i, 0))
        wq_spec = _const_spec((d_pad, d_pad), single_buffer)
        k_spec = pl.BlockSpec((blk_k, d_pad), lambda i, j: (j, 0))
        b_spec = pl.BlockSpec((1, blk_k), lambda i, j: (0, j))
        z_spec = pl.BlockSpec((blk_q, 1), lambda i, j: (i, 0))

        base_fp = (2 * blk_q * d_pad * itsz + nb * d_pad * d_pad * itsz
                   + 2 * blk_k * d_pad * itsz + 2 * blk_k * 4
                   + blk_q * d_pad * itsz + 3 * blk_q * blk_k * 4)

        z = pl.pallas_call(
            _attn_stats_kernel,
            out_shape=jax.ShapeDtypeStruct((nq_pad, 1), jnp.float32),
            grid=grid,
            in_specs=[q_spec, wq_spec, k_spec, b_spec],
            out_specs=z_spec,
            scratch_shapes=[pltpu.VMEM((blk_q, d_pad), cd),
                            pltpu.VMEM((blk_q, 1), jnp.float32),
                            pltpu.VMEM((blk_q, 1), jnp.float32)],
            compiler_params=_compiler_params(("parallel", "arbitrary"),
                                             base_fp + 8 * blk_q),
        )(q_p, wq_p, k_proj, bias_row)

        return pl.pallas_call(
            _attn_norm_kernel,
            out_shape=jax.ShapeDtypeStruct((nq_pad, nk_pad), od),
            grid=grid,
            in_specs=[q_spec, wq_spec, k_spec, b_spec, z_spec],
            out_specs=pl.BlockSpec((blk_q, blk_k), lambda i, j: (i, j)),
            scratch_shapes=[pltpu.VMEM((blk_q, d_pad), cd)],
            compiler_params=_compiler_params(
                ("parallel", "arbitrary"),
                base_fp + 2 * blk_q * 4 + 2 * blk_q * blk_k * osz),
        )(q_p, wq_p, k_proj, bias_row, z)

    try:
        attn = run(single_buffer=True)
    except Exception:
        # pl.Buffered(1) single-buffering unavailable on this build: fall back to
        # default double buffering of the constant-index operands (correct, just
        # a little more VMEM).
        attn = run(single_buffer=False)

    return attn[:n_q, :n_k]


# -------------------------------- reference -----------------------------------

def _ref_forward(query, key, params, h):
    """Pure-JAX reference mirroring the PyTorch forward."""
    wq, bq, wk, bk, wo_w, wo_b = params
    n, input_dim = query.shape
    d_k = input_dim // h
    Q = (query @ wq.T + bq).reshape(n, h, d_k)
    K = (key @ wk.T + bk).reshape(key.shape[0], h, d_k)
    scores = jnp.einsum('ihd,jhd->ijh', Q, K) / math.sqrt(d_k)
    s = jnp.einsum('ijh,h->ij', scores, wo_w[0]) + wo_b[0]
    return jax.nn.softmax(s, axis=-1)


def _init_params(key, input_dim, h):
    """Deterministic init mimicking torch.nn.Linear defaults (U(+/-1/sqrt(fan)))."""
    ks = jax.random.split(key, 6)
    bnd_in = 1.0 / math.sqrt(input_dim)
    bnd_h = 1.0 / math.sqrt(h)
    wq = jax.random.uniform(ks[0], (input_dim, input_dim), jnp.float32, -bnd_in, bnd_in)
    bq = jax.random.uniform(ks[1], (input_dim,), jnp.float32, -bnd_in, bnd_in)
    wk = jax.random.uniform(ks[2], (input_dim, input_dim), jnp.float32, -bnd_in, bnd_in)
    bk = jax.random.uniform(ks[3], (input_dim,), jnp.float32, -bnd_in, bnd_in)
    wo_w = jax.random.uniform(ks[4], (1, h), jnp.float32, -bnd_h, bnd_h)
    wo_b = jax.random.uniform(ks[5], (1,), jnp.float32, -bnd_h, bnd_h)
    return wq, bq, wk, bk, wo_w, wo_b


if __name__ == "__main__":
    INPUT_DIM, H, N = 32, 4, 8

    root = jax.random.PRNGKey(0)
    k_q, k_k, k_p, k_q2, k_k2 = jax.random.split(root, 5)
    query = jax.random.normal(k_q, (N, INPUT_DIM), jnp.float32)
    key_x = jax.random.normal(k_k, (N, INPUT_DIM), jnp.float32)
    params = _init_params(k_p, INPUT_DIM, H)
    ref = _ref_forward(query, key_x, params, H)

    # 1) f32 operands + f32 output (resident-key path): exact-semantics check.
    p32 = multi_headed_attention(query, key_x, params, H,
                                 compute_dtype=jnp.float32, out_dtype=jnp.float32)
    p32 = jax.block_until_ready(p32)
    assert p32.shape == (N, N)
    assert jnp.allclose(p32, ref, atol=1e-5, rtol=1e-5), "f32 mismatch vs reference"
    assert jnp.allclose(jnp.sum(p32, axis=-1), 1.0, atol=1e-5)

    # 2) default bf16 operands + bf16 output (f32 accumulation): relaxed tol.
    pbf = multi_headed_attention(query, key_x, params, H)
    pbf = jax.block_until_ready(pbf)
    assert jnp.allclose(pbf.astype(jnp.float32), ref, atol=2e-2), "bf16 mismatch"
    assert jnp.allclose(jnp.sum(pbf.astype(jnp.float32), axis=-1), 1.0, atol=1e-2)

    # 3) key-tiled two-pass (online-softmax) path, forced at a small shape.
    DIM2, H2, NQ2, NK2 = 64, 8, 70, 300
    q2 = jax.random.normal(k_q2, (NQ2, DIM2), jnp.float32)
    x2 = jax.random.normal(k_k2, (NK2, DIM2), jnp.float32)
    params2 = _init_params(jax.random.PRNGKey(1), DIM2, H2)
    ref2 = _ref_forward(q2, x2, params2, H2)
    p2 = multi_headed_attention(q2, x2, params2, H2,
                                compute_dtype=jnp.float32, out_dtype=jnp.float32,
                                block_q=32, block_k=128, max_resident_keys=0)
    p2 = jax.block_until_ready(p2)
    assert p2.shape == (NQ2, NK2)
    assert jnp.allclose(p2, ref2, atol=1e-4, rtol=1e-4), "tiled-path mismatch"
    assert jnp.allclose(jnp.sum(p2, axis=-1), 1.0, atol=1e-4)

    print("KERNEL_OK")
</pallas_src>

<mosaic_0001>
module attributes {stable_mosaic.version = 11 : i64} {
  func.func @_k_project_kernel(%arg0: i32, %arg1: memref<256x128xf32, #tpu.memory_space<vmem>>, %arg2: memref<128x128xf32, #tpu.memory_space<vmem>>, %arg3: memref<1x128xf32, #tpu.memory_space<vmem>>, %arg4: memref<256x128xf32, #tpu.memory_space<vmem>>) attributes {dimension_semantics = [#tpu.dimension_semantics<parallel>], iteration_bounds = array<i64: 1>, scalar_prefetch = 0 : i64, scratch_operands = 0 : i64, tpu.core_type = #tpu.core_type<tc>, window_params = [{transform_indices = @transform_0, window_bounds = array<i64: 256, 128>}, {pipeline_mode = #tpu.pipeline_mode<synchronous>, transform_indices = @transform_1, window_bounds = array<i64: 128, 128>}, {pipeline_mode = #tpu.pipeline_mode<synchronous>, transform_indices = @transform_2, window_bounds = array<i64: 1, 128>}, {transform_indices = @transform_3, window_bounds = array<i64: 256, 128>}]} {
    %c0 = arith.constant 0 : index
    %c0_0 = arith.constant 0 : index
    %0 = vector.load %arg1[%c0, %c0_0] : memref<256x128xf32, #tpu.memory_space<vmem>>, vector<256x128xf32>
    %c0_1 = arith.constant 0 : index
    %c0_2 = arith.constant 0 : index
    %1 = vector.load %arg2[%c0_1, %c0_2] : memref<128x128xf32, #tpu.memory_space<vmem>>, vector<128x128xf32>
    %cst = arith.constant dense<0.000000e+00> : vector<256x128xf32>
    %2 = tpu.matmul %0, %1, %cst {dimension_numbers = #tpu.dot_dimension_numbers<[1], [0], [0], [1], [0, 0, 1, 1], [], []>} : vector<256x128xf32>, vector<128x128xf32>, vector<256x128xf32> -> vector<256x128xf32>
    %c0_3 = arith.constant 0 : index
    %c0_4 = arith.constant 0 : index
    %3 = vector.load %arg3[%c0_3, %c0_4] : memref<1x128xf32, #tpu.memory_space<vmem>>, vector<1x128xf32>
    %4 = vector.broadcast %3 : vector<1x128xf32> to vector<256x128xf32>
    %5 = arith.addf %2, %4 : vector<256x128xf32>
    %c0_5 = arith.constant 0 : index
    %c0_6 = arith.constant 0 : index
    %6 = vector.load %arg4[%c0_5, %c0_6] : memref<256x128xf32, #tpu.memory_space<vmem>>, vector<256x128xf32>
    tpu.vector_store %arg4[%c0_5, %c0_6], %5 {strides = array<i32>} : memref<256x128xf32, #tpu.memory_space<vmem>>, vector<256x128xf32>,
    return
  }
  func.func @transform_0(%arg0: i32) -> (i32, i32) {
    %c0_i32 = arith.constant 0 : i32
    %c0_i32_0 = arith.constant 0 : i32
    return %arg0, %c0_i32 : i32, i32
  }
  func.func @transform_1(%arg0: i32) -> (i32, i32) {
    %c0_i32 = arith.constant 0 : i32
    %c0_i32_0 = arith.constant 0 : i32
    %c0_i32_1 = arith.constant 0 : i32
    return %c0_i32, %c0_i32_0 : i32, i32
  }
  func.func @transform_2(%arg0: i32) -> (i32, i32) {
    %c0_i32 = arith.constant 0 : i32
    %c0_i32_0 = arith.constant 0 : i32
    %c0_i32_1 = arith.constant 0 : i32
    return %c0_i32, %c0_i32_0 : i32, i32
  }
  func.func @transform_3(%arg0: i32) -> (i32, i32) {
    %c0_i32 = arith.constant 0 : i32
    %c0_i32_0 = arith.constant 0 : i32
    return %arg0, %c0_i32 : i32, i32
  }
}

</mosaic_0001>

<llo_original>
// kernel: tpu_custom_call.1
$region0: #{tpu_custom_call.1}
  #allocation0 [shape = 'u32[]', space=smem, size = 0x4, offset = 0x4, fixed_abs, tag = 'smem constant byte address 0x4 - core index']
  #allocation1 [shape = 'u32[144,128]{1,0:T(1,128)}', space=vmem, size = 0x12000, scoped, tag = 'internal scratch']
  %s0 = inlined_call_operand.hbm [shape: f32[256,128], index: 0, kind: input, shape index: {}]
  %s1 = inlined_call_operand.hbm [shape: f32[128,128], index: 1, kind: input, shape index: {}]
  %s2 = inlined_call_operand.vmem [shape: f32[1,128], index: 2, kind: input, shape index: {}]
  %s3 = inlined_call_operand.hbm [shape: f32[256,128], index: 3, kind: output, shape index: {}]
  %s4 = sld [smem:[#allocation0]]
  $region30: #{tpu_custom_call.1} parent=0
    _
  %s6 = ssub.s32 1, %s4
  %s7 = scalar_select 0, %s6, %s4
  $region1: #{tpu_custom_call.1} parent=0
    #allocation2 [shape = 'u8[131072]{0}', space=vmem, size = 0x20000, scoped, tag = 'input window, operand 0, single buffered']
    #allocation3 [shape = 's32[1]{0}', space=sflag, size = 0x4, scoped, tag = 'scoped memory for tpu_custom_call.1']
    #allocation4 [shape = 's32[1]{0}', space=sflag, size = 0x4, scoped, tag = 'scoped memory for tpu_custom_call.1']
    #allocation5 [shape = 'u8[65536]{0}', space=vmem, size = 0x10000, scoped, tag = 'input window, operand 1, single buffered']
    #allocation6 [shape = 's32[1]{0}', space=sflag, size = 0x4, scoped, tag = 'scoped memory for tpu_custom_call.1']
    #allocation7 [shape = 'u8[131072]{0}', space=vmem, size = 0x20000, scoped, tag = 'output window, operand 0, single buffered']
    %8 = vsyncpa [#allocation3], 0
    %9 = vsyncpa [#allocation6], 0
    %10 = vsyncpa [#allocation4], 0
    // Predicated region
    $region2: #{tpu_custom_call.1} parent=1 // pred_check
      _
    $region3: #{tpu_custom_call.1} parent=1 // pred_check_branch
      %12 = sbr.rel (0) target = $region5
    $region4: #{tpu_custom_call.1} parent=1 // pred_region
      %s14 = ssub.s32 4096, 4096
      %15 = vsyncadd [#allocation3], %s14
      %s16 = sshll.u32 [#allocation2], 4
      %s17 = int_to_ptr.vmem [resolvable:$true] %s16
      %22 = dma.hbm_to_vmem [thread:$0]  %s0, 4096, %s17, [#allocation3], 128, 128, 8
    $region5: #{tpu_custom_call.1} parent=1 // pred_fallthru
      _
    // Predicated region
    $region6: #{tpu_custom_call.1} parent=1 // pred_check
      _
    $region7: #{tpu_custom_call.1} parent=1 // pred_check_branch
      %24 = sbr.rel (0) target = $region9
    $region8: #{tpu_custom_call.1} parent=1 // pred_region
      %s26 = ssub.s32 2048, 2048
      %27 = vsyncadd [#allocation6], %s26
      %s28 = sshll.u32 [#allocation5], 4
      %s29 = int_to_ptr.vmem [resolvable:$true] %s28
      %34 = dma.hbm_to_vmem [thread:$0]  %s1, 2048, %s29, [#allocation6], 128, 128, 8
    $region9: #{tpu_custom_call.1} parent=1 // pred_fallthru
      _
    // Predicated region
    $region10: #{tpu_custom_call.1} parent=1 // pred_check
      _
    $region11: #{tpu_custom_call.1} parent=1 // pred_check_branch
      %36 = sbr.rel (0) target = $region13
    $region12: #{tpu_custom_call.1} parent=1 // pred_region
      _
    $region13: #{tpu_custom_call.1} parent=1 // pred_fallthru
      _
    // Predicated region
    $region14: #{tpu_custom_call.1} parent=1 // pred_check
      _
    $region15: #{tpu_custom_call.1} parent=1 // pred_check_branch
      %38 = sbr.rel (0) target = $region17
    $region16: #{tpu_custom_call.1} parent=1 // pred_region
      %39 = dma.done [#allocation3], 4096
    $region17: #{tpu_custom_call.1} parent=1 // pred_fallthru
      _
    // Predicated region
    $region18: #{tpu_custom_call.1} parent=1 // pred_check
      _
    $region19: #{tpu_custom_call.1} parent=1 // pred_check_branch
      %41 = sbr.rel (0) target = $region21
    $region20: #{tpu_custom_call.1} parent=1 // pred_region
      %42 = dma.done [#allocation6], 2048
    $region21: #{tpu_custom_call.1} parent=1 // pred_fallthru
      _
    %v43 = vld [vmem:[#allocation2] sm:$0xff]
    %v44 = vld [vmem:[#allocation2 + $0x8] sm:$0xff]
    %v45 = vld [vmem:[#allocation2 + $0x10] sm:$0xff]
    %v46 = vld [vmem:[#allocation2 + $0x18] sm:$0xff]
    %v47 = vld [vmem:[#allocation2 + $0x20] sm:$0xff]
    %v48 = vld [vmem:[#allocation2 + $0x28] sm:$0xff]
    %v49 = vld [vmem:[#allocation2 + $0x30] sm:$0xff]
    %v50 = vld [vmem:[#allocation2 + $0x38] sm:$0xff]
    %v51 = vld [vmem:[#allocation2 + $0x40] sm:$0xff]
    %v52 = vld [vmem:[#allocation2 + $0x48] sm:$0xff]
    %v53 = vld [vmem:[#allocation2 + $0x50] sm:$0xff]
    %v54 = vld [vmem:[#allocation2 + $0x58] sm:$0xff]
    %v55 = vld [vmem:[#allocation2 + $0x60] sm:$0xff]
    %v56 = vld [vmem:[#allocation2 + $0x68] sm:$0xff]
    %v57 = vld [vmem:[#allocation2 + $0x70] sm:$0xff]
    %v58 = vld [vmem:[#allocation2 + $0x78] sm:$0xff]
    %v59 = vld [vmem:[#allocation2 + $0x80] sm:$0xff]
    %v60 = vld [vmem:[#allocation2 + $0x88] sm:$0xff]
    %v61 = vld [vmem:[#allocation2 + $0x90] sm:$0xff]
    %v62 = vld [vmem:[#allocation2 + $0x98] sm:$0xff]
    %v63 = vld [vmem:[#allocation2 + $0xa0] sm:$0xff]
    %v64 = vld [vmem:[#allocation2 + $0xa8] sm:$0xff]
    %v65 = vld [vmem:[#allocation2 + $0xb0] sm:$0xff]
    %v66 = vld [vmem:[#allocation2 + $0xb8] sm:$0xff]
    %v67 = vld [vmem:[#allocation2 + $0xc0] sm:$0xff]
    %v68 = vld [vmem:[#allocation2 + $0xc8] sm:$0xff]
    %v69 = vld [vmem:[#allocation2 + $0xd0] sm:$0xff]
    %v70 = vld [vmem:[#allocation2 + $0xd8] sm:$0xff]
    %v71 = vld [vmem:[#allocation2 + $0xe0] sm:$0xff]
    %v72 = vld [vmem:[#allocation2 + $0xe8] sm:$0xff]
    %v73 = vld [vmem:[#allocation2 + $0xf0] sm:$0xff]
    %v74 = vld [vmem:[#allocation2 + $0xf8] sm:$0xff]
    %v75 = vld [vmem:[#allocation5] sm:$0xff]
    %v76 = vld [vmem:[#allocation5 + $0x8] sm:$0xff]
    %v77 = vld [vmem:[#allocation5 + $0x10] sm:$0xff]
    %v78 = vld [vmem:[#allocation5 + $0x18] sm:$0xff]
    %v79 = vld [vmem:[#allocation5 + $0x20] sm:$0xff]
    %v80 = vld [vmem:[#allocation5 + $0x28] sm:$0xff]
    %v81 = vld [vmem:[#allocation5 + $0x30] sm:$0xff]
    %v82 = vld [vmem:[#allocation5 + $0x38] sm:$0xff]
    %v83 = vld [vmem:[#allocation5 + $0x40] sm:$0xff]
    %v84 = vld [vmem:[#allocation5 + $0x48] sm:$0xff]
    %v85 = vld [vmem:[#allocation5 + $0x50] sm:$0xff]
    %v86 = vld [vmem:[#allocation5 + $0x58] sm:$0xff]
    %v87 = vld [vmem:[#allocation5 + $0x60] sm:$0xff]
    %v88 = vld [vmem:[#allocation5 + $0x68] sm:$0xff]
    %v89 = vld [vmem:[#allocation5 + $0x70] sm:$0xff]
    %v90 = vld [vmem:[#allocation5 + $0x78] sm:$0xff]
    %v91 = vld [vmem:[%s2] sm:$0x1]
    %v93 = vlaneseq
    %v94 = vshrl.u32 %v93, 7
    %v95 = vsub.s32 0, %v94
    %v96 = vrot.slane %v91, %v95
    %98 = vmatprep.subr.mxu0 0.0
    %99 = vmatpush1.msra.mxu0 %v75
    %100 = vmatprep.subr.mxu0 0.0
    %101 = vmatpush1.msra.mxu0 %v76
    %102 = vmatprep.subr.mxu0 0.0
    %103 = vmatpush1.msra.mxu0 %v77
    %104 = vmatprep.subr.mxu0 0.0
    %105 = vmatpush1.msra.mxu0 %v78
    %106 = vmatprep.subr.mxu0 0.0
    %107 = vmatpush1.msra.mxu0 %v79
    %108 = vmatprep.subr.mxu0 0.0
    %109 = vmatpush1.msra.mxu0 %v80
    %110 = vmatprep.subr.mxu0 0.0
    %111 = vmatpush1.msra.mxu0 %v81
    %112 = vmatprep.subr.mxu0 0.0
    %113 = vmatpush1.msra.mxu0 %v82
    %114 = vmatprep.subr.mxu0 0.0
    %115 = vmatpush1.msra.mxu0 %v83
    %116 = vmatprep.subr.mxu0 0.0
    %117 = vmatpush1.msra.mxu0 %v84
    %118 = vmatprep.subr.mxu0 0.0
    %119 = vmatpush1.msra.mxu0 %v85
    %120 = vmatprep.subr.mxu0 0.0
    %121 = vmatpush1.msra.mxu0 %v86
    %122 = vmatprep.subr.mxu0 0.0
    %123 = vmatpush1.msra.mxu0 %v87
    %124 = vmatprep.subr.mxu0 0.0
    %125 = vmatpush1.msra.mxu0 %v88
    %126 = vmatprep.subr.mxu0 0.0
    %127 = vmatpush1.msra.mxu0 %v89
    %128 = vmatprep.subr.mxu0 0.0
    %129 = vmatpush1.msra.mxu0 %v90
    %130 = vmatprep.subr.mxu0 0.0
    %131 = vmatpush1.msra.mxu0 0.0
    %132 = vmatprep.subr.mxu0 0.0
    %133 = vmatpush1.msra.mxu0 0.0
    %134 = vmatprep.subr.mxu0 0.0
    %135 = vmatpush1.msra.mxu0 0.0
    %136 = vmatprep.subr.mxu0 0.0
    %137 = vmatpush1.msra.mxu0 0.0
    %138 = vmatprep.subr.mxu0 0.0
    %139 = vmatpush1.msra.mxu0 0.0
    %140 = vmatprep.subr.mxu0 0.0
    %141 = vmatpush1.msra.mxu0 0.0
    %142 = vmatprep.subr.mxu0 0.0
    %143 = vmatpush1.msra.mxu0 0.0
    %144 = vmatprep.subr.mxu0 0.0
    %145 = vmatpush1.msra.mxu0 0.0
    %146 = vmatprep.subr.mxu0 0.0
    %147 = vmatpush1.msra.mxu0 0.0
    %148 = vmatprep.subr.mxu0 0.0
    %149 = vmatpush1.msra.mxu0 0.0
    %150 = vmatprep.subr.mxu0 0.0
    %151 = vmatpush1.msra.mxu0 0.0
    %152 = vmatprep.subr.mxu0 0.0
    %153 = vmatpush1.msra.mxu0 0.0
    %154 = vmatprep.subr.mxu0 0.0
    %155 = vmatpush1.msra.mxu0 0.0
    %156 = vmatprep.subr.mxu0 0.0
    %157 = vmatpush1.msra.mxu0 0.0
    %158 = vmatprep.subr.mxu0 0.0
    %159 = vmatpush1.msra.mxu0 0.0
    %160 = vmatprep.subr.mxu0 0.0
    %161 = vmatpush1.msra.mxu0 0.0
    %162 = vmatprep.mubr.f32.mxu0 0.0
    %163 = vmatmul.mubr.f32.gmra.mrb[0].mxu0 %v43
    %v164 = vpop.f32.mrb[0].mxu0
    %v165 = vadd.f32 %v96, %v164
    %v166 = vpop.f32.mrb[0].mxu0
    %167 = vmatprep.mubr.f32.mxu0 0.0
    %168 = vmatmul.mubr.f32.gmra.mrb[0].mxu0 %v44
    %v169 = vpop.f32.mrb[0].mxu0
    %v170 = vadd.f32 %v96, %v169
    %v171 = vpop.f32.mrb[0].mxu0
    %172 = vmatprep.mubr.f32.mxu0 0.0
    %173 = vmatmul.mubr.f32.gmra.mrb[0].mxu0 %v45
    %v174 = vpop.f32.mrb[0].mxu0
    %v175 = vadd.f32 %v96, %v174
    %v176 = vpop.f32.mrb[0].mxu0
    %177 = vmatprep.mubr.f32.mxu0 0.0
    %178 = vmatmul.mubr.f32.gmra.mrb[0].mxu0 %v46
    %v179 = vpop.f32.mrb[0].mxu0
    %v180 = vadd.f32 %v96, %v179
    %v181 = vpop.f32.mrb[0].mxu0
    %182 = vmatprep.mubr.f32.mxu0 0.0
    %183 = vmatmul.mubr.f32.gmra.mrb[0].mxu0 %v47
    %v184 = vpop.f32.mrb[0].mxu0
    %v185 = vadd.f32 %v96, %v184
    %v186 = vpop.f32.mrb[0].mxu0
    %187 = vmatprep.mubr.f32.mxu0 0.0
    %188 = vmatmul.mubr.f32.gmra.mrb[0].mxu0 %v48
    %v189 = vpop.f32.mrb[0].mxu0
    %v190 = vadd.f32 %v96, %v189
    %v191 = vpop.f32.mrb[0].mxu0
    %192 = vmatprep.mubr.f32.mxu0 0.0
    %193 = vmatmul.mubr.f32.gmra.mrb[0].mxu0 %v49
    %v194 = vpop.f32.mrb[0].mxu0
    %v195 = vadd.f32 %v96, %v194
    %v196 = vpop.f32.mrb[0].mxu0
    %197 = vmatprep.mubr.f32.mxu0 0.0
    %198 = vmatmul.mubr.f32.gmra.mrb[0].mxu0 %v50
    %v199 = vpop.f32.mrb[0].mxu0
    %v200 = vadd.f32 %v96, %v199
    %v201 = vpop.f32.mrb[0].mxu0
    %202 = vmatprep.mubr.f32.mxu0 0.0
    %203 = vmatmul.mubr.f32.gmra.mrb[0].mxu0 %v51
    %v204 = vpop.f32.mrb[0].mxu0
    %v205 = vadd.f32 %v96, %v204
    %v206 = vpop.f32.mrb[0].mxu0
    %207 = vmatprep.mubr.f32.mxu0 0.0
    %208 = vmatmul.mubr.f32.gmra.mrb[0].mxu0 %v52
    %v209 = vpop.f32.mrb[0].mxu0
    %v210 = vadd.f32 %v96, %v209
    %v211 = vpop.f32.mrb[0].mxu0
    %212 = vmatprep.mubr.f32.mxu0 0.0
    %213 = vmatmul.mubr.f32.gmra.mrb[0].mxu0 %v53
    %v214 = vpop.f32.mrb[0].mxu0
    %v215 = vadd.f32 %v96, %v214
    %v216 = vpop.f32.mrb[0].mxu0
    %217 = vmatprep.mubr.f32.mxu0 0.0
    %218 = vmatmul.mubr.f32.gmra.mrb[0].mxu0 %v54
    %v219 = vpop.f32.mrb[0].mxu0
    %v220 = vadd.f32 %v96, %v219
    %v221 = vpop.f32.mrb[0].mxu0
    %222 = vmatprep.mubr.f32.mxu0 0.0
    %223 = vmatmul.mubr.f32.gmra.mrb[0].mxu0 %v55
    %v224 = vpop.f32.mrb[0].mxu0
    %v225 = vadd.f32 %v96, %v224
    %v226 = vpop.f32.mrb[0].mxu0
    %227 = vmatprep.mubr.f32.mxu0 0.0
    %228 = vmatmul.mubr.f32.gmra.mrb[0].mxu0 %v56
    %v229 = vpop.f32.mrb[0].mxu0
    %v230 = vadd.f32 %v96, %v229
    %v231 = vpop.f32.mrb[0].mxu0
    %232 = vmatprep.mubr.f32.mxu0 0.0
    %233 = vmatmul.mubr.f32.gmra.mrb[0].mxu0 %v57
    %v234 = vpop.f32.mrb[0].mxu0
    %v235 = vadd.f32 %v96, %v234
    %v236 = vpop.f32.mrb[0].mxu0
    %237 = vmatprep.mubr.f32.mxu0 0.0
    %238 = vmatmul.mubr.f32.gmra.mrb[0].mxu0 %v58
    %v239 = vpop.f32.mrb[0].mxu0
    %v240 = vadd.f32 %v96, %v239
    %v241 = vpop.f32.mrb[0].mxu0
    %242 = vmatprep.mubr.f32.mxu0 0.0
    %243 = vmatmul.mubr.f32.gmra.mrb[0].mxu0 %v59
    %v244 = vpop.f32.mrb[0].mxu0
    %v245 = vadd.f32 %v96, %v244
    %v246 = vpop.f32.mrb[0].mxu0
    %247 = vmatprep.mubr.f32.mxu0 0.0
    %248 = vmatmul.mubr.f32.gmra.mrb[0].mxu0 %v60
    %v249 = vpop.f32.mrb[0].mxu0
    %v250 = vadd.f32 %v96, %v249
    %v251 = vpop.f32.mrb[0].mxu0
    %252 = vmatprep.mubr.f32.mxu0 0.0
    %253 = vmatmul.mubr.f32.gmra.mrb[0].mxu0 %v61
    %v254 = vpop.f32.mrb[0].mxu0
    %v255 = vadd.f32 %v96, %v254
    %v256 = vpop.f32.mrb[0].mxu0
    %257 = vmatprep.mubr.f32.mxu0 0.0
    %258 = vmatmul.mubr.f32.gmra.mrb[0].mxu0 %v62
    %v259 = vpop.f32.mrb[0].mxu0
    %v260 = vadd.f32 %v96, %v259
    %v261 = vpop.f32.mrb[0].mxu0
    %262 = vmatprep.mubr.f32.mxu0 0.0
    %263 = vmatmul.mubr.f32.gmra.mrb[0].mxu0 %v63
    %v264 = vpop.f32.mrb[0].mxu0
    %v265 = vadd.f32 %v96, %v264
    %v266 = vpop.f32.mrb[0].mxu0
    %267 = vmatprep.mubr.f32.mxu0 0.0
    %268 = vmatmul.mubr.f32.gmra.mrb[0].mxu0 %v64
    %v269 = vpop.f32.mrb[0].mxu0
    %v270 = vadd.f32 %v96, %v269
    %v271 = vpop.f32.mrb[0].mxu0
    %272 = vmatprep.mubr.f32.mxu0 0.0
    %273 = vmatmul.mubr.f32.gmra.mrb[0].mxu0 %v65
    %v274 = vpop.f32.mrb[0].mxu0
    %v275 = vadd.f32 %v96, %v274
    %v276 = vpop.f32.mrb[0].mxu0
    %277 = vmatprep.mubr.f32.mxu0 0.0
    %278 = vmatmul.mubr.f32.gmra.mrb[0].mxu0 %v66
    %v279 = vpop.f32.mrb[0].mxu0
    %v280 = vadd.f32 %v96, %v279
    %v281 = vpop.f32.mrb[0].mxu0
    %282 = vmatprep.mubr.f32.mxu0 0.0
    %283 = vmatmul.mubr.f32.gmra.mrb[0].mxu0 %v67
    %v284 = vpop.f32.mrb[0].mxu0
    %v285 = vadd.f32 %v96, %v284
    %v286 = vpop.f32.mrb[0].mxu0
    %287 = vmatprep.mubr.f32.mxu0 0.0
    %288 = vmatmul.mubr.f32.gmra.mrb[0].mxu0 %v68
    %v289 = vpop.f32.mrb[0].mxu0
    %v290 = vadd.f32 %v96, %v289
    %v291 = vpop.f32.mrb[0].mxu0
    %292 = vmatprep.mubr.f32.mxu0 0.0
    %293 = vmatmul.mubr.f32.gmra.mrb[0].mxu0 %v69
    %v294 = vpop.f32.mrb[0].mxu0
    %v295 = vadd.f32 %v96, %v294
    %v296 = vpop.f32.mrb[0].mxu0
    %297 = vmatprep.mubr.f32.mxu0 0.0
    %298 = vmatmul.mubr.f32.gmra.mrb[0].mxu0 %v70
    %v299 = vpop.f32.mrb[0].mxu0
    %v300 = vadd.f32 %v96, %v299
    %v301 = vpop.f32.mrb[0].mxu0
    %302 = vmatprep.mubr.f32.mxu0 0.0
    %303 = vmatmul.mubr.f32.gmra.mrb[0].mxu0 %v71
    %v304 = vpop.f32.mrb[0].mxu0
    %v305 = vadd.f32 %v96, %v304
    %v306 = vpop.f32.mrb[0].mxu0
    %307 = vmatprep.mubr.f32.mxu0 0.0
    %308 = vmatmul.mubr.f32.gmra.mrb[0].mxu0 %v72
    %v309 = vpop.f32.mrb[0].mxu0
    %v310 = vadd.f32 %v96, %v309
    %v311 = vpop.f32.mrb[0].mxu0
    %312 = vmatprep.mubr.f32.mxu0 0.0
    %313 = vmatmul.mubr.f32.gmra.mrb[0].mxu0 %v73
    %v314 = vpop.f32.mrb[0].mxu0
    %v315 = vadd.f32 %v96, %v314
    %v316 = vpop.f32.mrb[0].mxu0
    %317 = vmatprep.mubr.f32.mxu0 0.0
    %318 = vmatmul.mubr.f32.gmra.mrb[0].mxu0 %v74
    %v319 = vpop.f32.mrb[0].mxu0
    %v320 = vadd.f32 %v96, %v319
    %v321 = vpop.f32.mrb[0].mxu0
    %322 = vdwg.mxu0
    %323 = vst [vmem:[#allocation7] sm:$0xff] %v165
    %324 = vst [vmem:[#allocation7 + $0x8] sm:$0xff] %v170
    %325 = vst [vmem:[#allocation7 + $0x10] sm:$0xff] %v175
    %326 = vst [vmem:[#allocation7 + $0x18] sm:$0xff] %v180
    %327 = vst [vmem:[#allocation7 + $0x20] sm:$0xff] %v185
    %328 = vst [vmem:[#allocation7 + $0x28] sm:$0xff] %v190
    %329 = vst [vmem:[#allocation7 + $0x30] sm:$0xff] %v195
    %330 = vst [vmem:[#allocation7 + $0x38] sm:$0xff] %v200
    %331 = vst [vmem:[#allocation7 + $0x40] sm:$0xff] %v205
    %332 = vst [vmem:[#allocation7 + $0x48] sm:$0xff] %v210
    %333 = vst [vmem:[#allocation7 + $0x50] sm:$0xff] %v215
    %334 = vst [vmem:[#allocation7 + $0x58] sm:$0xff] %v220
    %335 = vst [vmem:[#allocation7 + $0x60] sm:$0xff] %v225
    %336 = vst [vmem:[#allocation7 + $0x68] sm:$0xff] %v230
    %337 = vst [vmem:[#allocation7 + $0x70] sm:$0xff] %v235
    %338 = vst [vmem:[#allocation7 + $0x78] sm:$0xff] %v240
    %339 = vst [vmem:[#allocation7 + $0x80] sm:$0xff] %v245
    %340 = vst [vmem:[#allocation7 + $0x88] sm:$0xff] %v250
    %341 = vst [vmem:[#allocation7 + $0x90] sm:$0xff] %v255
    %342 = vst [vmem:[#allocation7 + $0x98] sm:$0xff] %v260
    %343 = vst [vmem:[#allocation7 + $0xa0] sm:$0xff] %v265
    %344 = vst [vmem:[#allocation7 + $0xa8] sm:$0xff] %v270
    %345 = vst [vmem:[#allocation7 + $0xb0] sm:$0xff] %v275
    %346 = vst [vmem:[#allocation7 + $0xb8] sm:$0xff] %v280
    %347 = vst [vmem:[#allocation7 + $0xc0] sm:$0xff] %v285
    %348 = vst [vmem:[#allocation7 + $0xc8] sm:$0xff] %v290
    %349 = vst [vmem:[#allocation7 + $0xd0] sm:$0xff] %v295
    %350 = vst [vmem:[#allocation7 + $0xd8] sm:$0xff] %v300
    %351 = vst [vmem:[#allocation7 + $0xe0] sm:$0xff] %v305
    %352 = vst [vmem:[#allocation7 + $0xe8] sm:$0xff] %v310
    %353 = vst [vmem:[#allocation7 + $0xf0] sm:$0xff] %v315
    %354 = vst [vmem:[#allocation7 + $0xf8] sm:$0xff] %v320
    // Predicated region
    $region22: #{tpu_custom_call.1} parent=1 // pred_check
      _
    $region23: #{tpu_custom_call.1} parent=1 // pred_check_branch
      %356 = sbr.rel (0) target = $region25
    $region24: #{tpu_custom_call.1} parent=1 // pred_region
      %s358 = ssub.s32 4096, 4096
      %359 = vsyncadd [#allocation4], %s358
      %s360 = sshll.u32 [#allocation7], 4
      %s361 = int_to_ptr.vmem [resolvable:$true] %s360
      %366 = dma.vmem_to_hbm [thread:$0]  %s361, 4096, %s3, [#allocation4], 128, 128, 8
    $region25: #{tpu_custom_call.1} parent=1 // pred_fallthru
      _
    // Predicated region
    $region26: #{tpu_custom_call.1} parent=1 // pred_check
      _
    $region27: #{tpu_custom_call.1} parent=1 // pred_check_branch
      %368 = sbr.rel (0) target = $region29
    $region28: #{tpu_custom_call.1} parent=1 // pred_region
      %369 = dma.done [#allocation4], 4096
    $region29: #{tpu_custom_call.1} parent=1 // pred_fallthru
      _
    %370 = vsyncpa [#allocation3], 1
    %371 = vsyncpa [#allocation6], 1
    %372 = vsyncpa [#allocation4], 1

</llo_original>
